<compile_context>
chip_gen: v5e
topology: v5e:2x2
jax: 0.10.0
libtpu: 0.0.40
codegen_flags: <defaults>
</compile_context>

<pallas_src>
import functools

import jax
import jax.numpy as jnp
from jax import lax
from jax.experimental import pallas as pl
from jax.experimental.pallas import tpu as pltpu

_LANES = 128


def _round_up(a, b):
    return ((a + b - 1) // b) * b


def _dwconv2d_kernel(x_ref, w_ref, b_ref, o_ref, *, K, S, CB, LT, row_tile,
                     hoist_w):
    """One (batch, channel-block, output-row-block) grid step.

    x_ref: (S*S * RB_in, Lw_in)  phase-major, halo'd input rows; lanes are
                                 (W-position, channel) packed (w-major, c-minor)
    w_ref: (K, K, Lw_out)        per-tap weights replicated across the W lanes
    b_ref: (1, Lw_out)           bias replicated across the W lanes
    o_ref: (RB, Lw_out)          output rows; lane = wo*CB + c
    """
    RB, Lw_out = o_ref.shape
    S2 = S * S
    RB_in = x_ref.shape[0] // S2
    n_col = Lw_out // LT
    n_chunk = RB // row_tile

    # Static Python loops: short trip counts, full scheduler visibility.
    for ci in range(n_col):
        c0 = ci * LT
        # Hoisted once per lane-column tile (not per row chunk / per tap).
        bias_b = jnp.broadcast_to(
            b_ref[:, pl.ds(c0, LT)].astype(jnp.float32), (row_tile, LT))
        if hoist_w:
            w_taps = [[w_ref[kh, pl.ds(kw, 1), pl.ds(c0, LT)].astype(jnp.float32)
                       for kw in range(K)] for kh in range(K)]
        for rc in range(n_chunk):
            j0 = rc * row_tile
            acc = bias_b
            for kh in range(K):
                qh = kh // S
                for kw in range(K):
                    qw = kw // S
                    p = (kh % S) * S + (kw % S)          # static spatial phase
                    patch = x_ref[pl.ds(p * RB_in + j0 + qh, row_tile),
                                  pl.ds(qw * CB + c0, LT)]
                    if hoist_w:
                        wv = w_taps[kh][kw]
                    else:
                        wv = w_ref[kh, pl.ds(kw, 1),
                                   pl.ds(c0, LT)].astype(jnp.float32)
                    # TODO(synk): for bf16 inputs cast a whole kh window once
                    # instead of per tap (K^2 casts of overlapping data).
                    acc = acc + wv * patch.astype(jnp.float32)
            o_ref[pl.ds(j0, row_tile), pl.ds(c0, LT)] = acc.astype(o_ref.dtype)


def depthwise_conv2d(x, weight, bias=None, *, stride=1, padding=0):
    """Forward of DepthWiseConv2d: nn.Conv2d(Cin, Cout, K, stride, padding,
    groups=Cin).  x: (N, Cin, H, W); weight: (Cout, 1, K, K); bias: (Cout,)."""
    N, Cin, H, W = x.shape
    Cout, win, K, Kw = weight.shape
    assert K == Kw and win == 1 and Cout % Cin == 0
    S, P = int(stride), int(padding)
    mult = Cout // Cin

    Hp, Wp = H + 2 * P, W + 2 * P
    Ho = (Hp - K) // S + 1
    Wo = (Wp - K) // S + 1
    assert Ho > 0 and Wo > 0

    isz = jnp.dtype(x.dtype).itemsize

    # Channel blocking: lanes hold (W-position, channel) pairs, so small Cout
    # still fills 128 lanes; Cout > 128 splits into 128-channel blocks.
    CB = Cout if Cout < _LANES else _LANES
    n_cblk = pl.cdiv(Cout, CB)
    Cp = n_cblk * CB

    # Space-to-depth phases (stride) on both spatial dims: every tap load in
    # the kernel is contiguous (no strided sublane / lane access).
    S2 = S * S
    qmax = (K - 1) // S
    Hq, Wq = pl.cdiv(Hp, S), pl.cdiv(Wp, S)

    Wo_lanes = Wo * CB
    Lw_out = _round_up(Wo_lanes, _LANES)
    # Column tile + weight hoisting chosen to keep acc + patch + hoisted taps
    # under ~32 vregs.
    LT = 256 if (Lw_out % 256 == 0 and K * K * 2 <= 24) else _LANES
    hoist_w = K * K * (LT // _LANES) <= 24
    Lw_in = _round_up(max(Wq * CB, qmax * CB + Lw_out), _LANES)

    # Output-row blocks: bound the per-step input slab to ~4 MiB so the
    # double-buffered pipeline fits v7x's 64 MiB VMEM and there are enough
    # grid steps for both TensorCores.
    row_tile = 8
    RB = min(64, _round_up(Ho, row_tile))
    while RB > row_tile and S2 * _round_up(RB + qmax, 8) * Lw_in * isz > (4 << 20):
        RB -= row_tile
    RB_in = _round_up(RB + qmax, 8)
    n_rb = pl.cdiv(Ho, RB)
    Hq_need = max(Hq, (n_rb - 1) * RB + RB_in)

    # ---- layout plumbing (fused relayout each way) ---------------------------
    # TODO(synk): in a full model keep activations in this packed layout across
    # layers so the NCHW<->packed transposes amortize (v5e HBM traffic).
    xw = x
    if mult > 1:
        # TODO(synk): for Cin >= 128 carry the depth multiplier on the weight
        # side instead of replicating the input.
        xw = jnp.repeat(xw, mult, axis=1)                          # (N, Cout, H, W)
    xw = jnp.pad(xw, ((0, 0), (0, Cp - Cout), (P, P), (P, P)))     # (N, Cp, Hp, Wp)
    xw = jnp.pad(xw, ((0, 0), (0, 0), (0, Hq * S - Hp), (0, Wq * S - Wp)))
    xw = xw.reshape(N, n_cblk, CB, Hq, S, Wq, S)
    xw = jnp.transpose(xw, (0, 1, 4, 6, 3, 5, 2))                  # (N,nc,Sh,Sw,Hq,Wq,CB)
    xw = xw.reshape(N, n_cblk, S2, Hq, Wq * CB)
    xw = jnp.pad(xw, ((0, 0), (0, 0), (0, 0),
                      (0, Hq_need - Hq), (0, Lw_in - Wq * CB)))
    # Halo'd output-row blocks (tiny duplication keeps BlockSpecs rectangular).
    row_idx = (jnp.arange(n_rb, dtype=jnp.int32)[:, None] * RB
               + jnp.arange(RB_in, dtype=jnp.int32)[None, :])
    xw = jnp.take(xw, row_idx, axis=3)                             # (N,nc,S2,n_rb,RB_in,L)
    xw = jnp.transpose(xw, (0, 1, 3, 2, 4, 5))
    xw = xw.reshape(N, n_cblk, n_rb, S2 * RB_in, Lw_in)

    wp = jnp.pad(weight[:, 0], ((0, Cp - Cout), (0, 0), (0, 0))).astype(jnp.float32)
    wp = jnp.transpose(wp.reshape(n_cblk, CB, K, K), (0, 2, 3, 1))  # (nc, K, K, CB)
    wp = jnp.pad(jnp.tile(wp, (1, 1, 1, Wo)),
                 ((0, 0), (0, 0), (0, 0), (0, Lw_out - Wo_lanes)))

    bvec = (jnp.zeros((Cout,), jnp.float32) if bias is None
            else bias.astype(jnp.float32))
    bp = jnp.pad(bvec, (0, Cp - Cout)).reshape(n_cblk, CB)
    bp = jnp.pad(jnp.tile(bp, (1, Wo)), ((0, 0), (0, Lw_out - Wo_lanes)))
    bp = bp.reshape(n_cblk, 1, Lw_out)

    kernel = functools.partial(_dwconv2d_kernel, K=K, S=S, CB=CB, LT=LT,
                               row_tile=row_tile, hoist_w=hoist_w)

    # VMEM budget from real dtypes and buffer counts (2x in, 2x out, 2x w/b).
    in_blk = S2 * RB_in * Lw_in * isz
    out_blk = RB * Lw_out * isz
    w_blk = K * _round_up(K, 8) * Lw_out * 4
    b_blk = 8 * Lw_out * 4
    needed = 2 * (in_blk + out_blk) + 2 * (w_blk + b_blk)
    # TODO(synk): if `needed` ever exceeds ~48 MiB (huge Wo*CB), add a
    # lane-column grid axis instead of the in-kernel column loop.
    vmem_limit = int(min(max(needed * 13 // 10, 32 << 20), 64 << 20))

    out = pl.pallas_call(
        kernel,
        out_shape=jax.ShapeDtypeStruct((N, n_cblk, n_rb, RB, Lw_out), x.dtype),
        grid=(N, n_cblk, n_rb),
        in_specs=[
            pl.BlockSpec((None, None, None, S2 * RB_in, Lw_in),
                         lambda n, cb, rb: (n, cb, rb, 0, 0)),
            pl.BlockSpec((None, K, K, Lw_out), lambda n, cb, rb: (cb, 0, 0, 0)),
            pl.BlockSpec((None, 1, Lw_out), lambda n, cb, rb: (cb, 0, 0)),
        ],
        out_specs=pl.BlockSpec((None, None, None, RB, Lw_out),
                               lambda n, cb, rb: (n, cb, rb, 0, 0)),
        compiler_params=pltpu.CompilerParams(
            dimension_semantics=("parallel", "parallel", "parallel"),
            vmem_limit_bytes=vmem_limit),
    )(xw, wp, bp)

    # Unpack: rows -> Ho, lanes -> (Wo, CB), back to PyTorch NCHW.
    out = out.reshape(N, n_cblk, n_rb * RB, Lw_out)[:, :, :Ho, :Wo_lanes]
    out = out.reshape(N, n_cblk, Ho, Wo, CB)
    out = jnp.transpose(out, (0, 1, 4, 2, 3)).reshape(N, Cp, Ho, Wo)
    return out[:, :Cout]


def _reference(x, weight, bias, *, stride, padding):
    Cin = x.shape[1]
    out = lax.conv_general_dilated(
        x, weight,
        window_strides=(stride, stride),
        padding=[(padding, padding), (padding, padding)],
        dimension_numbers=("NCHW", "OIHW", "NCHW"),
        feature_group_count=Cin,
    )
    if bias is not None:
        out = out + bias[None, :, None, None]
    return out


if __name__ == "__main__":
    key = jax.random.PRNGKey(0)

    def make_case(ck, N, Cin, Cout, H, W, K):
        kx, kwt, kb = jax.random.split(ck, 3)
        x = jax.random.normal(kx, (N, Cin, H, W), jnp.float32)
        bound = 1.0 / (K * K) ** 0.5
        w = jax.random.uniform(kwt, (Cout, 1, K, K), jnp.float32,
                               minval=-bound, maxval=bound)
        b = jax.random.uniform(kb, (Cout,), jnp.float32,
                               minval=-bound, maxval=bound)
        return x, w, b

    cases = [
        # (N, Cin, Cout, H, W, K, stride, padding)
        (2, 4, 8, 16, 16, 3, 1, 1),      # reviewed config (depth multiplier 2)
        (2, 8, 8, 16, 16, 3, 2, 1),      # strided (subsampling-style)
        (1, 256, 256, 12, 12, 3, 1, 0),  # >128 channels -> channel blocking
    ]
    keys = jax.random.split(key, len(cases))
    for cfg, ck in zip(cases, keys):
        N, Cin, Cout, H, W, K, s, p = cfg
        x, w, b = make_case(ck, N, Cin, Cout, H, W, K)
        fn = jax.jit(functools.partial(depthwise_conv2d, stride=s, padding=p))
        out = jax.block_until_ready(fn(x, w, b))
        ref = _reference(x, w, b, stride=s, padding=p)
        if not jnp.allclose(out, ref, atol=1e-5, rtol=1e-5):
            raise AssertionError(
                f"Pallas depthwise conv mismatch vs reference for cfg={cfg}")

    print("KERNEL_OK")
</pallas_src>

<mosaic_0001>
module attributes {stable_mosaic.version = 11 : i64} {
  func.func @_dwconv2d_kernel(%arg0: i32, %arg1: i32, %arg2: i32, %arg3: memref<1x1x1x24x256xf32, #tpu.memory_space<vmem>>, %arg4: memref<1x3x3x128xf32, #tpu.memory_space<vmem>>, %arg5: memref<1x1x128xf32, #tpu.memory_space<vmem>>, %arg6: memref<1x1x1x16x128xf32, #tpu.memory_space<vmem>>) attributes {dimension_semantics = [#tpu.dimension_semantics<parallel>, #tpu.dimension_semantics<parallel>, #tpu.dimension_semantics<parallel>], iteration_bounds = array<i64: 2, 1, 1>, scalar_prefetch = 0 : i64, scratch_operands = 0 : i64, tpu.core_type = #tpu.core_type<tc>, window_params = [{transform_indices = @transform_0, window_bounds = array<i64: 1, 1, 1, 24, 256>}, {transform_indices = @transform_1, window_bounds = array<i64: 1, 3, 3, 128>}, {transform_indices = @transform_2, window_bounds = array<i64: 1, 1, 128>}, {transform_indices = @transform_3, window_bounds = array<i64: 1, 1, 1, 16, 128>}]} {
    %c0 = arith.constant 0 : index
    %c0_0 = arith.constant 0 : index
    %c0_1 = arith.constant 0 : index
    %0 = vector.load %arg5[%c0, %c0_0, %c0_1] : memref<1x1x128xf32, #tpu.memory_space<vmem>>, vector<1x1x128xf32>
    %1 = vector.shape_cast %0 : vector<1x1x128xf32> to vector<1x128xf32>
    %2 = vector.shape_cast %1 : vector<1x128xf32> to vector<1x128xf32>
    %3 = vector.broadcast %2 : vector<1x128xf32> to vector<8x128xf32>
    %c0_2 = arith.constant 0 : index
    %c0_3 = arith.constant 0 : index
    %c0_4 = arith.constant 0 : index
    %c0_5 = arith.constant 0 : index
    %4 = vector.load %arg4[%c0_2, %c0_3, %c0_4, %c0_5] : memref<1x3x3x128xf32, #tpu.memory_space<vmem>>, vector<1x1x1x128xf32>
    %5 = vector.shape_cast %4 : vector<1x1x1x128xf32> to vector<1x128xf32>
    %c0_6 = arith.constant 0 : index
    %c0_7 = arith.constant 0 : index
    %c1 = arith.constant 1 : index
    %c0_8 = arith.constant 0 : index
    %6 = vector.load %arg4[%c0_6, %c0_7, %c1, %c0_8] : memref<1x3x3x128xf32, #tpu.memory_space<vmem>>, vector<1x1x1x128xf32>
    %7 = vector.shape_cast %6 : vector<1x1x1x128xf32> to vector<1x128xf32>
    %c0_9 = arith.constant 0 : index
    %c0_10 = arith.constant 0 : index
    %c2 = arith.constant 2 : index
    %c0_11 = arith.constant 0 : index
    %8 = vector.load %arg4[%c0_9, %c0_10, %c2, %c0_11] : memref<1x3x3x128xf32, #tpu.memory_space<vmem>>, vector<1x1x1x128xf32>
    %9 = vector.shape_cast %8 : vector<1x1x1x128xf32> to vector<1x128xf32>
    %c0_12 = arith.constant 0 : index
    %c1_13 = arith.constant 1 : index
    %c0_14 = arith.constant 0 : index
    %c0_15 = arith.constant 0 : index
    %10 = vector.load %arg4[%c0_12, %c1_13, %c0_14, %c0_15] : memref<1x3x3x128xf32, #tpu.memory_space<vmem>>, vector<1x1x1x128xf32>
    %11 = vector.shape_cast %10 : vector<1x1x1x128xf32> to vector<1x128xf32>
    %c0_16 = arith.constant 0 : index
    %c1_17 = arith.constant 1 : index
    %c1_18 = arith.constant 1 : index
    %c0_19 = arith.constant 0 : index
    %12 = vector.load %arg4[%c0_16, %c1_17, %c1_18, %c0_19] : memref<1x3x3x128xf32, #tpu.memory_space<vmem>>, vector<1x1x1x128xf32>
    %13 = vector.shape_cast %12 : vector<1x1x1x128xf32> to vector<1x128xf32>
    %c0_20 = arith.constant 0 : index
    %c1_21 = arith.constant 1 : index
    %c2_22 = arith.constant 2 : index
    %c0_23 = arith.constant 0 : index
    %14 = vector.load %arg4[%c0_20, %c1_21, %c2_22, %c0_23] : memref<1x3x3x128xf32, #tpu.memory_space<vmem>>, vector<1x1x1x128xf32>
    %15 = vector.shape_cast %14 : vector<1x1x1x128xf32> to vector<1x128xf32>
    %c0_24 = arith.constant 0 : index
    %c2_25 = arith.constant 2 : index
    %c0_26 = arith.constant 0 : index
    %c0_27 = arith.constant 0 : index
    %16 = vector.load %arg4[%c0_24, %c2_25, %c0_26, %c0_27] : memref<1x3x3x128xf32, #tpu.memory_space<vmem>>, vector<1x1x1x128xf32>
    %17 = vector.shape_cast %16 : vector<1x1x1x128xf32> to vector<1x128xf32>
    %c0_28 = arith.constant 0 : index
    %c2_29 = arith.constant 2 : index
    %c1_30 = arith.constant 1 : index
    %c0_31 = arith.constant 0 : index
    %18 = vector.load %arg4[%c0_28, %c2_29, %c1_30, %c0_31] : memref<1x3x3x128xf32, #tpu.memory_space<vmem>>, vector<1x1x1x128xf32>
    %19 = vector.shape_cast %18 : vector<1x1x1x128xf32> to vector<1x128xf32>
    %c0_32 = arith.constant 0 : index
    %c2_33 = arith.constant 2 : index
    %c2_34 = arith.constant 2 : index
    %c0_35 = arith.constant 0 : index
    %20 = vector.load %arg4[%c0_32, %c2_33, %c2_34, %c0_35] : memref<1x3x3x128xf32, #tpu.memory_space<vmem>>, vector<1x1x1x128xf32>
    %21 = vector.shape_cast %20 : vector<1x1x1x128xf32> to vector<1x128xf32>
    %c0_36 = arith.constant 0 : index
    %c0_37 = arith.constant 0 : index
    %c0_38 = arith.constant 0 : index
    %c0_39 = arith.constant 0 : index
    %c0_40 = arith.constant 0 : index
    %22 = vector.load %arg3[%c0_36, %c0_37, %c0_38, %c0_39, %c0_40] : memref<1x1x1x24x256xf32, #tpu.memory_space<vmem>>, vector<1x1x1x8x128xf32>
    %23 = vector.shape_cast %22 : vector<1x1x1x8x128xf32> to vector<8x128xf32>
    %24 = vector.broadcast %5 : vector<1x128xf32> to vector<8x128xf32>
    %25 = arith.mulf %24, %23 : vector<8x128xf32>
    %26 = arith.addf %3, %25 : vector<8x128xf32>
    %c0_41 = arith.constant 0 : index
    %c0_42 = arith.constant 0 : index
    %c0_43 = arith.constant 0 : index
    %c0_44 = arith.constant 0 : index
    %c8 = arith.constant 8 : index
    %27 = vector.load %arg3[%c0_41, %c0_42, %c0_43, %c0_44, %c8] : memref<1x1x1x24x256xf32, #tpu.memory_space<vmem>>, vector<1x1x1x8x128xf32>
    %28 = vector.shape_cast %27 : vector<1x1x1x8x128xf32> to vector<8x128xf32>
    %29 = vector.broadcast %7 : vector<1x128xf32> to vector<8x128xf32>
    %30 = arith.mulf %29, %28 : vector<8x128xf32>
    %31 = arith.addf %26, %30 : vector<8x128xf32>
    %c0_45 = arith.constant 0 : index
    %c0_46 = arith.constant 0 : index
    %c0_47 = arith.constant 0 : index
    %c0_48 = arith.constant 0 : index
    %c16 = arith.constant 16 : index
    %32 = vector.load %arg3[%c0_45, %c0_46, %c0_47, %c0_48, %c16] : memref<1x1x1x24x256xf32, #tpu.memory_space<vmem>>, vector<1x1x1x8x128xf32>
    %33 = vector.shape_cast %32 : vector<1x1x1x8x128xf32> to vector<8x128xf32>
    %34 = vector.broadcast %9 : vector<1x128xf32> to vector<8x128xf32>
    %35 = arith.mulf %34, %33 : vector<8x128xf32>
    %36 = arith.addf %31, %35 : vector<8x128xf32>
    %c0_49 = arith.constant 0 : index
    %c0_50 = arith.constant 0 : index
    %c0_51 = arith.constant 0 : index
    %c1_52 = arith.constant 1 : index
    %c0_53 = arith.constant 0 : index
    %37 = vector.load %arg3[%c0_49, %c0_50, %c0_51, %c1_52, %c0_53] : memref<1x1x1x24x256xf32, #tpu.memory_space<vmem>>, vector<1x1x1x8x128xf32>
    %38 = vector.shape_cast %37 : vector<1x1x1x8x128xf32> to vector<8x128xf32>
    %39 = vector.broadcast %11 : vector<1x128xf32> to vector<8x128xf32>
    %40 = arith.mulf %39, %38 : vector<8x128xf32>
    %41 = arith.addf %36, %40 : vector<8x128xf32>
    %c0_54 = arith.constant 0 : index
    %c0_55 = arith.constant 0 : index
    %c0_56 = arith.constant 0 : index
    %c1_57 = arith.constant 1 : index
    %c8_58 = arith.constant 8 : index
    %42 = vector.load %arg3[%c0_54, %c0_55, %c0_56, %c1_57, %c8_58] : memref<1x1x1x24x256xf32, #tpu.memory_space<vmem>>, vector<1x1x1x8x128xf32>
    %43 = vector.shape_cast %42 : vector<1x1x1x8x128xf32> to vector<8x128xf32>
    %44 = vector.broadcast %13 : vector<1x128xf32> to vector<8x128xf32>
    %45 = arith.mulf %44, %43 : vector<8x128xf32>
    %46 = arith.addf %41, %45 : vector<8x128xf32>
    %c0_59 = arith.constant 0 : index
    %c0_60 = arith.constant 0 : index
    %c0_61 = arith.constant 0 : index
    %c1_62 = arith.constant 1 : index
    %c16_63 = arith.constant 16 : index
    %47 = vector.load %arg3[%c0_59, %c0_60, %c0_61, %c1_62, %c16_63] : memref<1x1x1x24x256xf32, #tpu.memory_space<vmem>>, vector<1x1x1x8x128xf32>
    %48 = vector.shape_cast %47 : vector<1x1x1x8x128xf32> to vector<8x128xf32>
    %49 = vector.broadcast %15 : vector<1x128xf32> to vector<8x128xf32>
    %50 = arith.mulf %49, %48 : vector<8x128xf32>
    %51 = arith.addf %46, %50 : vector<8x128xf32>
    %c0_64 = arith.constant 0 : index
    %c0_65 = arith.constant 0 : index
    %c0_66 = arith.constant 0 : index
    %c2_67 = arith.constant 2 : index
    %c0_68 = arith.constant 0 : index
    %52 = vector.load %arg3[%c0_64, %c0_65, %c0_66, %c2_67, %c0_68] : memref<1x1x1x24x256xf32, #tpu.memory_space<vmem>>, vector<1x1x1x8x128xf32>
    %53 = vector.shape_cast %52 : vector<1x1x1x8x128xf32> to vector<8x128xf32>
    %54 = vector.broadcast %17 : vector<1x128xf32> to vector<8x128xf32>
    %55 = arith.mulf %54, %53 : vector<8x128xf32>
    %56 = arith.addf %51, %55 : vector<8x128xf32>
    %c0_69 = arith.constant 0 : index
    %c0_70 = arith.constant 0 : index
    %c0_71 = arith.constant 0 : index
    %c2_72 = arith.constant 2 : index
    %c8_73 = arith.constant 8 : index
    %57 = vector.load %arg3[%c0_69, %c0_70, %c0_71, %c2_72, %c8_73] : memref<1x1x1x24x256xf32, #tpu.memory_space<vmem>>, vector<1x1x1x8x128xf32>
    %58 = vector.shape_cast %57 : vector<1x1x1x8x128xf32> to vector<8x128xf32>
    %59 = vector.broadcast %19 : vector<1x128xf32> to vector<8x128xf32>
    %60 = arith.mulf %59, %58 : vector<8x128xf32>
    %61 = arith.addf %56, %60 : vector<8x128xf32>
    %c0_74 = arith.constant 0 : index
    %c0_75 = arith.constant 0 : index
    %c0_76 = arith.constant 0 : index
    %c2_77 = arith.constant 2 : index
    %c16_78 = arith.constant 16 : index
    %62 = vector.load %arg3[%c0_74, %c0_75, %c0_76, %c2_77, %c16_78] : memref<1x1x1x24x256xf32, #tpu.memory_space<vmem>>, vector<1x1x1x8x128xf32>
    %63 = vector.shape_cast %62 : vector<1x1x1x8x128xf32> to vector<8x128xf32>
    %64 = vector.broadcast %21 : vector<1x128xf32> to vector<8x128xf32>
    %65 = arith.mulf %64, %63 : vector<8x128xf32>
    %66 = arith.addf %61, %65 : vector<8x128xf32>
    %c0_79 = arith.constant 0 : index
    %c0_80 = arith.constant 0 : index
    %c0_81 = arith.constant 0 : index
    %c0_82 = arith.constant 0 : index
    %c0_83 = arith.constant 0 : index
    %67 = vector.load %arg6[%c0_79, %c0_80, %c0_81, %c0_82, %c0_83] : memref<1x1x1x16x128xf32, #tpu.memory_space<vmem>>, vector<1x1x1x8x128xf32>
    %68 = vector.shape_cast %67 : vector<1x1x1x8x128xf32> to vector<8x128xf32>
    %69 = vector.shape_cast %66 : vector<8x128xf32> to vector<1x1x1x8x128xf32>
    tpu.vector_store %arg6[%c0_79, %c0_80, %c0_81, %c0_82, %c0_83], %69 {strides = array<i32>} : memref<1x1x1x16x128xf32, #tpu.memory_space<vmem>>, vector<1x1x1x8x128xf32>,
    %c0_84 = arith.constant 0 : index
    %c0_85 = arith.constant 0 : index
    %c0_86 = arith.constant 0 : index
    %c8_87 = arith.constant 8 : index
    %c0_88 = arith.constant 0 : index
    %70 = vector.load %arg3[%c0_84, %c0_85, %c0_86, %c8_87, %c0_88] : memref<1x1x1x24x256xf32, #tpu.memory_space<vmem>>, vector<1x1x1x8x128xf32>
    %71 = vector.shape_cast %70 : vector<1x1x1x8x128xf32> to vector<8x128xf32>
    %72 = vector.broadcast %5 : vector<1x128xf32> to vector<8x128xf32>
    %73 = arith.mulf %72, %71 : vector<8x128xf32>
    %74 = arith.addf %3, %73 : vector<8x128xf32>
    %c0_89 = arith.constant 0 : index
    %c0_90 = arith.constant 0 : index
    %c0_91 = arith.constant 0 : index
    %c8_92 = arith.constant 8 : index
    %c8_93 = arith.constant 8 : index
    %75 = vector.load %arg3[%c0_89, %c0_90, %c0_91, %c8_92, %c8_93] : memref<1x1x1x24x256xf32, #tpu.memory_space<vmem>>, vector<1x1x1x8x128xf32>
    %76 = vector.shape_cast %75 : vector<1x1x1x8x128xf32> to vector<8x128xf32>
    %77 = vector.broadcast %7 : vector<1x128xf32> to vector<8x128xf32>
    %78 = arith.mulf %77, %76 : vector<8x128xf32>
    %79 = arith.addf %74, %78 : vector<8x128xf32>
    %c0_94 = arith.constant 0 : index
    %c0_95 = arith.constant 0 : index
    %c0_96 = arith.constant 0 : index
    %c8_97 = arith.constant 8 : index
    %c16_98 = arith.constant 16 : index
    %80 = vector.load %arg3[%c0_94, %c0_95, %c0_96, %c8_97, %c16_98] : memref<1x1x1x24x256xf32, #tpu.memory_space<vmem>>, vector<1x1x1x8x128xf32>
    %81 = vector.shape_cast %80 : vector<1x1x1x8x128xf32> to vector<8x128xf32>
    %82 = vector.broadcast %9 : vector<1x128xf32> to vector<8x128xf32>
    %83 = arith.mulf %82, %81 : vector<8x128xf32>
    %84 = arith.addf %79, %83 : vector<8x128xf32>
    %c0_99 = arith.constant 0 : index
    %c0_100 = arith.constant 0 : index
    %c0_101 = arith.constant 0 : index
    %c9 = arith.constant 9 : index
    %c0_102 = arith.constant 0 : index
    %85 = vector.load %arg3[%c0_99, %c0_100, %c0_101, %c9, %c0_102] : memref<1x1x1x24x256xf32, #tpu.memory_space<vmem>>, vector<1x1x1x8x128xf32>
    %86 = vector.shape_cast %85 : vector<1x1x1x8x128xf32> to vector<8x128xf32>
    %87 = vector.broadcast %11 : vector<1x128xf32> to vector<8x128xf32>
    %88 = arith.mulf %87, %86 : vector<8x128xf32>
    %89 = arith.addf %84, %88 : vector<8x128xf32>
    %c0_103 = arith.constant 0 : index
    %c0_104 = arith.constant 0 : index
    %c0_105 = arith.constant 0 : index
    %c9_106 = arith.constant 9 : index
    %c8_107 = arith.constant 8 : index
    %90 = vector.load %arg3[%c0_103, %c0_104, %c0_105, %c9_106, %c8_107] : memref<1x1x1x24x256xf32, #tpu.memory_space<vmem>>, vector<1x1x1x8x128xf32>
    %91 = vector.shape_cast %90 : vector<1x1x1x8x128xf32> to vector<8x128xf32>
    %92 = vector.broadcast %13 : vector<1x128xf32> to vector<8x128xf32>
    %93 = arith.mulf %92, %91 : vector<8x128xf32>
    %94 = arith.addf %89, %93 : vector<8x128xf32>
    %c0_108 = arith.constant 0 : index
    %c0_109 = arith.constant 0 : index
    %c0_110 = arith.constant 0 : index
    %c9_111 = arith.constant 9 : index
    %c16_112 = arith.constant 16 : index
    %95 = vector.load %arg3[%c0_108, %c0_109, %c0_110, %c9_111, %c16_112] : memref<1x1x1x24x256xf32, #tpu.memory_space<vmem>>, vector<1x1x1x8x128xf32>
    %96 = vector.shape_cast %95 : vector<1x1x1x8x128xf32> to vector<8x128xf32>
    %97 = vector.broadcast %15 : vector<1x128xf32> to vector<8x128xf32>
    %98 = arith.mulf %97, %96 : vector<8x128xf32>
    %99 = arith.addf %94, %98 : vector<8x128xf32>
    %c0_113 = arith.constant 0 : index
    %c0_114 = arith.constant 0 : index
    %c0_115 = arith.constant 0 : index
    %c10 = arith.constant 10 : index
    %c0_116 = arith.constant 0 : index
    %100 = vector.load %arg3[%c0_113, %c0_114, %c0_115, %c10, %c0_116] : memref<1x1x1x24x256xf32, #tpu.memory_space<vmem>>, vector<1x1x1x8x128xf32>
    %101 = vector.shape_cast %100 : vector<1x1x1x8x128xf32> to vector<8x128xf32>
    %102 = vector.broadcast %17 : vector<1x128xf32> to vector<8x128xf32>
    %103 = arith.mulf %102, %101 : vector<8x128xf32>
    %104 = arith.addf %99, %103 : vector<8x128xf32>
    %c0_117 = arith.constant 0 : index
    %c0_118 = arith.constant 0 : index
    %c0_119 = arith.constant 0 : index
    %c10_120 = arith.constant 10 : index
    %c8_121 = arith.constant 8 : index
    %105 = vector.load %arg3[%c0_117, %c0_118, %c0_119, %c10_120, %c8_121] : memref<1x1x1x24x256xf32, #tpu.memory_space<vmem>>, vector<1x1x1x8x128xf32>
    %106 = vector.shape_cast %105 : vector<1x1x1x8x128xf32> to vector<8x128xf32>
    %107 = vector.broadcast %19 : vector<1x128xf32> to vector<8x128xf32>
    %108 = arith.mulf %107, %106 : vector<8x128xf32>
    %109 = arith.addf %104, %108 : vector<8x128xf32>
    %c0_122 = arith.constant 0 : index
    %c0_123 = arith.constant 0 : index
    %c0_124 = arith.constant 0 : index
    %c10_125 = arith.constant 10 : index
    %c16_126 = arith.constant 16 : index
    %110 = vector.load %arg3[%c0_122, %c0_123, %c0_124, %c10_125, %c16_126] : memref<1x1x1x24x256xf32, #tpu.memory_space<vmem>>, vector<1x1x1x8x128xf32>
    %111 = vector.shape_cast %110 : vector<1x1x1x8x128xf32> to vector<8x128xf32>
    %112 = vector.broadcast %21 : vector<1x128xf32> to vector<8x128xf32>
    %113 = arith.mulf %112, %111 : vector<8x128xf32>
    %114 = arith.addf %109, %113 : vector<8x128xf32>
    %c0_127 = arith.constant 0 : index
    %c0_128 = arith.constant 0 : index
    %c0_129 = arith.constant 0 : index
    %c8_130 = arith.constant 8 : index
    %c0_131 = arith.constant 0 : index
    %115 = vector.load %arg6[%c0_127, %c0_128, %c0_129, %c8_130, %c0_131] : memref<1x1x1x16x128xf32, #tpu.memory_space<vmem>>, vector<1x1x1x8x128xf32>
    %116 = vector.shape_cast %115 : vector<1x1x1x8x128xf32> to vector<8x128xf32>
    %117 = vector.shape_cast %114 : vector<8x128xf32> to vector<1x1x1x8x128xf32>
    tpu.vector_store %arg6[%c0_127, %c0_128, %c0_129, %c8_130, %c0_131], %117 {strides = array<i32>} : memref<1x1x1x16x128xf32, #tpu.memory_space<vmem>>, vector<1x1x1x8x128xf32>,
    return
  }
  func.func @transform_0(%arg0: i32, %arg1: i32, %arg2: i32) -> (i32, i32, i32, i32, i32) {
    %c0_i32 = arith.constant 0 : i32
    %c0_i32_0 = arith.constant 0 : i32
    %c0_i32_1 = arith.constant 0 : i32
    return %arg0, %arg1, %arg2, %c0_i32, %c0_i32_0 : i32, i32, i32, i32, i32
  }
  func.func @transform_1(%arg0: i32, %arg1: i32, %arg2: i32) -> (i32, i32, i32, i32) {
    %c0_i32 = arith.constant 0 : i32
    %c0_i32_0 = arith.constant 0 : i32
    %c0_i32_1 = arith.constant 0 : i32
    %c0_i32_2 = arith.constant 0 : i32
    return %arg1, %c0_i32, %c0_i32_0, %c0_i32_1 : i32, i32, i32, i32
  }
  func.func @transform_2(%arg0: i32, %arg1: i32, %arg2: i32) -> (i32, i32, i32) {
    %c0_i32 = arith.constant 0 : i32
    %c0_i32_0 = arith.constant 0 : i32
    %c0_i32_1 = arith.constant 0 : i32
    return %arg1, %c0_i32, %c0_i32_0 : i32, i32, i32
  }
  func.func @transform_3(%arg0: i32, %arg1: i32, %arg2: i32) -> (i32, i32, i32, i32, i32) {
    %c0_i32 = arith.constant 0 : i32
    %c0_i32_0 = arith.constant 0 : i32
    %c0_i32_1 = arith.constant 0 : i32
    return %arg0, %arg1, %arg2, %c0_i32, %c0_i32_0 : i32, i32, i32, i32, i32
  }
}

</mosaic_0001>

<llo_original>
// kernel: depthwise_conv2d.1
$region0: #{depthwise_conv2d.1}
  #allocation0 [shape = 'u32[]', space=smem, size = 0x4, offset = 0x4, fixed_abs, tag = 'smem constant byte address 0x4 - core index']
  #allocation1 [shape = 'u32[72,128]{1,0:T(1,128)}', space=vmem, size = 0x9000, scoped, tag = 'internal scratch']
  %s0 = inlined_call_operand.vmem [shape: f32[2,1,1,24,256], index: 0, kind: input, shape index: {}]
  %s1 = inlined_call_operand.vmem [shape: f32[1,3,3,128], index: 1, kind: input, shape index: {}]
  %s2 = inlined_call_operand.vmem [shape: f32[1,1,128], index: 2, kind: input, shape index: {}]
  %s3 = inlined_call_operand.vmem [shape: f32[2,1,1,16,128], index: 3, kind: output, shape index: {}]
  %s4 = sld [smem:[#allocation0]]
  $region45: #{depthwise_conv2d.1} parent=0
    _
  %s6 = ssub.s32 1, %s4
  %s7 = scalar_select 0, %s6, %s4
  loop: start=0, step=1, limit=4
  $region2: #{depthwise_conv2d.1} parent=0 // loop_pre_header
    _
  $region3: #{depthwise_conv2d.1} parent=0 // loop_header
    %s9 = sphi 0, %s13
    %p10 = scmp.ge.s32.totalorder %s9, 4
    %s16 = sphi 0, %s35
    %s17 = sphi 0, %s31
    %s18 = sphi 0, %s27
    %s19 = sphi 0, %s16
    %s20 = sphi 0, %s17
    %s21 = sphi 0, %s18
    %s22 = sphi 0, %s19
    %s23 = sphi 0, %s20
    %s24 = sphi 0, %s21
    %s42 = sphi 0, %s44
    %s45 = sphi 0, %s42
    %s46 = sphi 0, %s45
    %s62 = sphi 0, %s46
    %s68 = sphi 0, %s70
    %s71 = sphi 0, %s68
    %s72 = sphi 0, %s71
    %s88 = sphi 0, %s72
    %s94 = sphi 0, %s96
    %s97 = sphi 0, %s94
    %s98 = sphi 0, %s97
    %s114 = sphi 0, %s98
    %s124 = sphi 0, %s126
    %s127 = sphi 0, %s124
    %s128 = sphi 0, %s127
    %s144 = sphi 0, %s128
  $region4: #{depthwise_conv2d.1} parent=0 // loop_header_branch
    %12 = sbr.rel (%p10) target = $region8
  $region5: #{depthwise_conv2d.1} parent=0 // loop_body
    %s14 = ssub.s32 %s9, 1
    %s15 = ssub.s32 %s9, 2
    %s25 = sadd.s32 1, %s18
    %p26 = scmp.ge.s32.totalorder %s25, 1
    %s27 = scalar_select %p26, 0, %s25
    %s28 = sadd.s32 1, %s17
    %s29 = scalar_select %p26, %s28, %s17
    %p30 = scmp.ge.s32.totalorder %s29, 1
    %s31 = scalar_select %p30, 0, %s29
    %s32 = sadd.s32 1, %s16
    %s33 = scalar_select %p30, %s32, %s16
    %p34 = scmp.ge.s32.totalorder %s33, 2
    %s35 = scalar_select %p34, 0, %s33
    %s36 = ssub.s32 %s16, %s35
    %s37 = ssub.s32 %s17, %s31
    %s38 = sor.u32 %s36, %s37
    %s39 = ssub.s32 %s18, %s27
    %s40 = sor.u32 %s38, %s39
    %p41 = scmp.eq.s32.totalorder %s40, 0
    %s43 = sadd.s32 %s42, 1
    %s44 = scalar_select %p41, %s42, %s43
    %p47 = pneg %p41
    %p48 = scmp.eq.s32.totalorder %s9, 1
    %p49 = por %p47, %p48
    %p50 = scmp.ne.s32.totalorder %s42, %s45
    %p51 = scmp.eq.s32.totalorder %s9, 0
    %p52 = por %p50, %p51
    %p53 = scmp.ne.s32.totalorder %s42, %s45
    %p54 = scmp.eq.s32.totalorder %s14, 1
    %p55 = por %p53, %p54
    %p56 = scmp.ne.s32.totalorder %s45, %s46
    %p57 = scmp.eq.s32.totalorder %s14, 0
    %p58 = por %p56, %p57
    %p59 = scmp.ne.s32.totalorder %s45, %s46
    %p60 = scmp.eq.s32.totalorder %s15, 1
    %p61 = por %p59, %p60
    %p63 = scmp.ne.s32.totalorder %s46, %s62
    %p64 = scmp.eq.s32.totalorder %s15, 0
    %p65 = por %p63, %p64
    %s66 = ssub.s32 %s17, %s31
    %p67 = scmp.eq.s32.totalorder %s66, 0
    %s69 = sadd.s32 %s68, 1
    %s70 = scalar_select %p67, %s68, %s69
    %p73 = pneg %p67
    %p74 = scmp.eq.s32.totalorder %s9, 1
    %p75 = por %p73, %p74
    %p76 = scmp.ne.s32.totalorder %s68, %s71
    %p77 = scmp.eq.s32.totalorder %s9, 0
    %p78 = por %p76, %p77
    %p79 = scmp.ne.s32.totalorder %s68, %s71
    %p80 = scmp.eq.s32.totalorder %s14, 1
    %p81 = por %p79, %p80
    %p82 = scmp.ne.s32.totalorder %s71, %s72
    %p83 = scmp.eq.s32.totalorder %s14, 0
    %p84 = por %p82, %p83
    %p85 = scmp.ne.s32.totalorder %s71, %s72
    %p86 = scmp.eq.s32.totalorder %s15, 1
    %p87 = por %p85, %p86
    %p89 = scmp.ne.s32.totalorder %s72, %s88
    %p90 = scmp.eq.s32.totalorder %s15, 0
    %p91 = por %p89, %p90
    %s92 = ssub.s32 %s17, %s31
    %p93 = scmp.eq.s32.totalorder %s92, 0
    %s95 = sadd.s32 %s94, 1
    %s96 = scalar_select %p93, %s94, %s95
    %p99 = pneg %p93
    %p100 = scmp.eq.s32.totalorder %s9, 1
    %p101 = por %p99, %p100
    %p102 = scmp.ne.s32.totalorder %s94, %s97
    %p103 = scmp.eq.s32.totalorder %s9, 0
    %p104 = por %p102, %p103
    %p105 = scmp.ne.s32.totalorder %s94, %s97
    %p106 = scmp.eq.s32.totalorder %s14, 1
    %p107 = por %p105, %p106
    %p108 = scmp.ne.s32.totalorder %s97, %s98
    %p109 = scmp.eq.s32.totalorder %s14, 0
    %p110 = por %p108, %p109
    %p111 = scmp.ne.s32.totalorder %s97, %s98
    %p112 = scmp.eq.s32.totalorder %s15, 1
    %p113 = por %p111, %p112
    %p115 = scmp.ne.s32.totalorder %s98, %s114
    %p116 = scmp.eq.s32.totalorder %s15, 0
    %p117 = por %p115, %p116
    %s118 = ssub.s32 %s16, %s35
    %s119 = ssub.s32 %s17, %s31
    %s120 = sor.u32 %s118, %s119
    %s121 = ssub.s32 %s18, %s27
    %s122 = sor.u32 %s120, %s121
    %p123 = scmp.eq.s32.totalorder %s122, 0
    %s125 = sadd.s32 %s124, 1
    %s126 = scalar_select %p123, %s124, %s125
    %p129 = pneg %p123
    %p130 = scmp.eq.s32.totalorder %s9, 1
    %p131 = por %p129, %p130
    %p132 = scmp.ne.s32.totalorder %s124, %s127
    %p133 = scmp.eq.s32.totalorder %s9, 0
    %p134 = por %p132, %p133
    %p135 = scmp.ne.s32.totalorder %s124, %s127
    %p136 = scmp.eq.s32.totalorder %s14, 1
    %p137 = por %p135, %p136
    %p138 = scmp.ne.s32.totalorder %s127, %s128
    %p139 = scmp.eq.s32.totalorder %s14, 0
    %p140 = por %p138, %p139
    %p141 = scmp.ne.s32.totalorder %s127, %s128
    %p142 = scmp.eq.s32.totalorder %s15, 1
    %p143 = por %p141, %p142
    %p145 = scmp.ne.s32.totalorder %s128, %s144
    %p146 = scmp.eq.s32.totalorder %s15, 0
    %p147 = por %p145, %p146
    %p148 = scmp.le.s32.totalorder 1, %s9
    %p149 = scmp.lt.s32.totalorder %s9, 3
    %p150 = pnand %p148, %p149
    %p151 = pneg %p150
    // Predicated region
    $region9: #{depthwise_conv2d.1} parent=5 // pred_check
      _
    $region10: #{depthwise_conv2d.1} parent=5 // pred_check_branch
      %153 = sbr.rel (%p150) target = $region12
    $region11: #{depthwise_conv2d.1} parent=5 // pred_region
      %s154 = ssub.s32 %s9, 1
      // Predicated region
      $region13: #{depthwise_conv2d.1} parent=11 // pred_check
        %p155 = pneg %p84
      $region14: #{depthwise_conv2d.1} parent=11 // pred_check_branch
        %157 = sbr.rel (%p155) target = $region16
      $region15: #{depthwise_conv2d.1} parent=11 // pred_region
        %p158 = scmp.lt.s32.totalorder %s20, 0
        %s159 = scalar_select %p158, %s20, 0
        %s160 = smul.addr %s159, 3
        %s161 = smul.addr %s160, 4
        %s162 = scalar_lea.vmem %s1, %s161
      $region16: #{depthwise_conv2d.1} parent=11 // pred_fallthru
        _
      // Predicated region
      $region17: #{depthwise_conv2d.1} parent=11 // pred_check
        %p163 = pneg %p110
      $region18: #{depthwise_conv2d.1} parent=11 // pred_check_branch
        %165 = sbr.rel (%p163) target = $region20
      $region19: #{depthwise_conv2d.1} parent=11 // pred_region
        %p166 = scmp.lt.s32.totalorder %s20, 0
        %s167 = scalar_select %p166, %s20, 0
        %s168 = scalar_lea.vmem %s2, %s167
      $region20: #{depthwise_conv2d.1} parent=11 // pred_fallthru
        _
    $region12: #{depthwise_conv2d.1} parent=5 // pred_fallthru
      _
    %p169 = scmp.lt.s32.totalorder %s9, 2
    // Predicated region
    $region21: #{depthwise_conv2d.1} parent=5 // pred_check
      %p170 = pneg %p169
    $region22: #{depthwise_conv2d.1} parent=5 // pred_check_branch
      %172 = sbr.rel (%p170) target = $region24
    $region23: #{depthwise_conv2d.1} parent=5 // pred_region
      // Predicated region
      $region25: #{depthwise_conv2d.1} parent=23 // pred_check
        %p173 = pneg %p52
      $region26: #{depthwise_conv2d.1} parent=23 // pred_check_branch
        %175 = sbr.rel (%p173) target = $region28
      $region27: #{depthwise_conv2d.1} parent=23 // pred_region
        %p176 = scmp.lt.s32.totalorder %s16, 1
        %s177 = scalar_select %p176, %s16, 1
        %p178 = scmp.lt.s32.totalorder %s17, 0
        %s179 = scalar_select %p178, %s17, 0
        %p180 = scmp.lt.s32.totalorder %s18, 0
        %s181 = scalar_select %p180, %s18, 0
        %s182 = smul.addr %s181, 6
        %s183 = smul.addr %s179, 6
        %s184 = sadd.s32 %s182, %s183
        %s185 = smul.addr %s177, 6
        %s186 = sadd.s32 %s184, %s185
        %s187 = smul.addr %s186, 8
        %s188 = scalar_lea.vmem %s0, %s187
      $region28: #{depthwise_conv2d.1} parent=23 // pred_fallthru
        _
    $region24: #{depthwise_conv2d.1} parent=5 // pred_fallthru
      _
    %p189 = scmp.le.s32.totalorder 1, %s9
    %p190 = scmp.lt.s32.totalorder %s9, 3
    %p191 = pnand %p189, %p190
    %p192 = pneg %p191
    // Predicated region
    $region29: #{depthwise_conv2d.1} parent=5 // pred_check
      _
    $region30: #{depthwise_conv2d.1} parent=5 // pred_check_branch
      %194 = sbr.rel (%p191) target = $region32
    $region31: #{depthwise_conv2d.1} parent=5 // pred_region
      %s195 = ssub.s32 %s9, 1
      %p196 = scmp.lt.s32.totalorder %s19, 1
      %s197 = scalar_select %p196, %s19, 1
      %p198 = scmp.lt.s32.totalorder %s20, 0
      %s199 = scalar_select %p198, %s20, 0
      %p200 = scmp.lt.s32.totalorder %s21, 0
      %s201 = scalar_select %p200, %s21, 0
      %s202 = smul.addr %s201, 6
      %s203 = smul.addr %s199, 6
      %s204 = sadd.s32 %s202, %s203
      %s205 = smul.addr %s197, 6
      %s206 = sadd.s32 %s204, %s205
      %s207 = smul.addr %s206, 8
      %s208 = scalar_lea.vmem %s0, %s207
      %p209 = pneg %p58
      %p210 = pneg %p55
      %p211 = scmp.lt.s32.totalorder %s20, 0
      %s212 = scalar_select %p211, %s20, 0
      %s213 = smul.addr %s212, 3
      %s214 = smul.addr %s213, 4
      %s215 = scalar_lea.vmem %s1, %s214
      %p216 = pneg %p84
      %p217 = pneg %p81
      %p218 = scmp.lt.s32.totalorder %s20, 0
      %s219 = scalar_select %p218, %s20, 0
      %s220 = scalar_lea.vmem %s2, %s219
      %p221 = pneg %p110
      %p222 = pneg %p107
      %p223 = pneg %p140
      %p224 = pneg %p137
      %p225 = scmp.lt.s32.totalorder %s19, 1
      %s226 = scalar_select %p225, %s19, 1
      %p227 = scmp.lt.s32.totalorder %s20, 0
      %s228 = scalar_select %p227, %s20, 0
      %p229 = scmp.lt.s32.totalorder %s21, 0
      %s230 = scalar_select %p229, %s21, 0
      %s231 = smul.addr %s230, 2
      %s232 = smul.addr %s228, 2
      %s233 = sadd.s32 %s231, %s232
      %s234 = smul.addr %s226, 2
      %s235 = sadd.s32 %s233, %s234
      %s236 = smul.addr %s235, 8
      %s237 = scalar_lea.vmem %s3, %s236
      %p238 = scmp.lt.s32.totalorder %s19, 1
      %s239 = scalar_select %p238, %s19, 1
      %p240 = scmp.lt.s32.totalorder %s20, 0
      %s241 = scalar_select %p240, %s20, 0
      %p242 = scmp.lt.s32.totalorder %s21, 0
      %s243 = scalar_select %p242, %s21, 0
      %s244 = smul.addr %s243, 6
      %s245 = smul.addr %s241, 6
      %s246 = sadd.s32 %s244, %s245
      %s247 = smul.addr %s239, 6
      %s248 = sadd.s32 %s246, %s247
      %s249 = smul.addr %s248, 8
      %s250 = scalar_lea.vmem %s0, %s249
      %p251 = scmp.lt.s32.totalorder %s20, 0
      %s252 = scalar_select %p251, %s20, 0
      %s253 = smul.addr %s252, 3
      %s254 = smul.addr %s253, 4
      %s255 = scalar_lea.vmem %s1, %s254
      %p256 = scmp.lt.s32.totalorder %s20, 0
      %s257 = scalar_select %p256, %s20, 0
      %s258 = scalar_lea.vmem %s2, %s257
      %p259 = scmp.lt.s32.totalorder %s19, 1
      %s260 = scalar_select %p259, %s19, 1
      %p261 = scmp.lt.s32.totalorder %s20, 0
      %s262 = scalar_select %p261, %s20, 0
      %p263 = scmp.lt.s32.totalorder %s21, 0
      %s264 = scalar_select %p263, %s21, 0
      %s265 = smul.addr %s264, 2
      %s266 = smul.addr %s262, 2
      %s267 = sadd.s32 %s265, %s266
      %s268 = smul.addr %s260, 2
      %s269 = sadd.s32 %s267, %s268
      %s270 = smul.addr %s269, 8
      %s271 = scalar_lea.vmem %s3, %s270
      %v272 = vld [vmem:[%s258] sm:$0x1]
      %v274 = vperm.slane %v272, 0
      %v276 = vld [vmem:[%s255] sm:$0x1]
      %v277 = vld [vmem:[%s255 + $0x1] sm:$0x1]
      %v278 = vld [vmem:[%s255 + $0x2] sm:$0x1]
      %s279 = scalar_lea.vmem %s255, 4
      %v280 = vld [vmem:[%s279] sm:$0x1]
      %v281 = vld [vmem:[%s279 + $0x1] sm:$0x1]
      %v282 = vld [vmem:[%s279 + $0x2] sm:$0x1]
      %s283 = scalar_lea.vmem %s255, 8
      %v284 = vld [vmem:[%s283] sm:$0x1]
      %v285 = vld [vmem:[%s283 + $0x1] sm:$0x1]
      %v286 = vld [vmem:[%s283 + $0x2] sm:$0x1]
      %v287 = vld [vmem:[%s250] sm:$0xff]
      %v288 = vperm.slane %v276, 0
      %v289 = vmul.f32 %v288, %v287
      %v290 = vadd.f32 %v274, %v289
      %v291 = vld [vmem:[%s250 + $0x8] sm:$0xff]
      %v292 = vperm.slane %v277, 0
      %295 = vrot.lane.b32.xlu0 %v287, 120
      %v296 = vpop.permute.xlu0 %295
      %297 = vrot.lane.b32.xlu0 %v291, 120
      %v298 = vpop.permute.xlu0 %297
      %vm299 = vcmask 982016
      %v300 = vsel %vm299, %v296, %v298
      %v302 = vmul.f32 %v292, %v300
      %v303 = vadd.f32 %v290, %v302
      %v304 = vperm.slane %v278, 0
      %305 = vrot.lane.b32.xlu0 %v287, 112
      %v306 = vpop.permute.xlu0 %305
      %307 = vrot.lane.b32.xlu0 %v291, 112
      %v308 = vpop.permute.xlu0 %307
      %vm309 = vcmask 916480
      %v310 = vsel %vm309, %v306, %v308
      %v312 = vmul.f32 %v304, %v310
      %v313 = vadd.f32 %v303, %v312
      %v314 = vld [vmem:[%s250] sm:$0xfe]
      %v315 = vld [vmem:[%s250 + $0x10] sm:$0x1]
      %v316 = vperm.slane %v280, 0
      %v317 = vmul.f32 %v316, %v314
      %v318 = vmul.f32 %v316, %v315
      %vm321 = vcmask 1046528
      %v322 = vrot.slane %v317, 1
      %v323 = vrot.slane %v318, 1
      %v324 = vsel %vm321, %v322, %v323
      %v326 = vadd.f32 %v313, %v324
      %v327 = vld [vmem:[%s250 + $0x8] sm:$0xfe]
      %v328 = vld [vmem:[%s250 + $0x18] sm:$0x1]
      %v329 = vperm.slane %v281, 0
      %v334 = vrot.slane %v314, 1
      %v335 = vrot.slane %v315, 1
      %v336 = vsel %vm321, %v334, %v335
      %v337 = vrot.slane %v327, 1
      %v338 = vrot.slane %v328, 1
      %v339 = vsel %vm321, %v337, %v338
      %340 = vrot.lane.b32.xlu0 %v336, 120
      %v341 = vpop.permute.xlu0 %340
      %342 = vrot.lane.b32.xlu0 %v339, 120
      %v343 = vpop.permute.xlu0 %342
      %v344 = vsel %vm299, %v341, %v343
      %v346 = vmul.f32 %v329, %v344
      %v347 = vadd.f32 %v326, %v346
      %v348 = vperm.slane %v282, 0
      %349 = vrot.lane.b32.xlu0 %v336, 112
      %v350 = vpop.permute.xlu0 %349
      %351 = vrot.lane.b32.xlu0 %v339, 112
      %v352 = vpop.permute.xlu0 %351
      %v353 = vsel %vm309, %v350, %v352
      %v355 = vmul.f32 %v348, %v353
      %v356 = vadd.f32 %v347, %v355
      %v357 = vld [vmem:[%s250] sm:$0xfc]
      %v358 = vld [vmem:[%s250 + $0x10] sm:$0x3]
      %v359 = vperm.slane %v284, 0
      %v360 = vmul.f32 %v359, %v357
      %v361 = vmul.f32 %v359, %v358
      %vm364 = vcmask 1045504
      %v365 = vrot.slane %v360, 2
      %v366 = vrot.slane %v361, 2
      %v367 = vsel %vm364, %v365, %v366
      %v369 = vadd.f32 %v356, %v367
      %v370 = vld [vmem:[%s250 + $0x8] sm:$0xfc]
      %v371 = vld [vmem:[%s250 + $0x18] sm:$0x3]
      %v372 = vperm.slane %v285, 0
      %v377 = vrot.slane %v357, 2
      %v378 = vrot.slane %v358, 2
      %v379 = vsel %vm364, %v377, %v378
      %v380 = vrot.slane %v370, 2
      %v381 = vrot.slane %v371, 2
      %v382 = vsel %vm364, %v380, %v381
      %383 = vrot.lane.b32.xlu0 %v379, 120
      %v384 = vpop.permute.xlu0 %383
      %385 = vrot.lane.b32.xlu0 %v382, 120
      %v386 = vpop.permute.xlu0 %385
      %v387 = vsel %vm299, %v384, %v386
      %v389 = vmul.f32 %v372, %v387
      %v390 = vadd.f32 %v369, %v389
      %v391 = vperm.slane %v286, 0
      %392 = vrot.lane.b32.xlu0 %v379, 112
      %v393 = vpop.permute.xlu0 %392
      %394 = vrot.lane.b32.xlu0 %v382, 112
      %v395 = vpop.permute.xlu0 %394
      %v396 = vsel %vm309, %v393, %v395
      %v398 = vmul.f32 %v391, %v396
      %v399 = vadd.f32 %v390, %v398
      %400 = vst [vmem:[%s271] sm:$0xff] %v399
      %v401 = vld [vmem:[%s250 + $0x10] sm:$0xff]
      %v402 = vmul.f32 %v288, %v401
      %v403 = vadd.f32 %v274, %v402
      %v404 = vld [vmem:[%s250 + $0x18] sm:$0xff]
      %407 = vrot.lane.b32.xlu0 %v401, 120
      %v408 = vpop.permute.xlu0 %407
      %409 = vrot.lane.b32.xlu0 %v404, 120
      %v410 = vpop.permute.xlu0 %409
      %v411 = vsel %vm299, %v408, %v410
      %v413 = vmul.f32 %v292, %v411
      %v414 = vadd.f32 %v403, %v413
      %415 = vrot.lane.b32.xlu0 %v401, 112
      %v416 = vpop.permute.xlu0 %415
      %417 = vrot.lane.b32.xlu0 %v404, 112
      %v418 = vpop.permute.xlu0 %417
      %v419 = vsel %vm309, %v416, %v418
      %v421 = vmul.f32 %v304, %v419
      %v422 = vadd.f32 %v414, %v421
      %v423 = vld [vmem:[%s250 + $0x10] sm:$0xfe]
      %v424 = vld [vmem:[%s250 + $0x20] sm:$0x1]
      %v425 = vmul.f32 %v316, %v423
      %v426 = vmul.f32 %v316, %v424
      %v429 = vrot.slane %v425, 1
      %v430 = vrot.slane %v426, 1
      %v431 = vsel %vm321, %v429, %v430
      %v433 = vadd.f32 %v422, %v431
      %v434 = vld [vmem:[%s250 + $0x10] sm:$0xfe]
      %v435 = vld [vmem:[%s250 + $0x18] sm:$0xfe]
      %v436 = vld [vmem:[%s250 + $0x20] sm:$0x1]
      %v437 = vld [vmem:[%s250 + $0x28] sm:$0x1]
      %v442 = vrot.slane %v434, 1
      %v443 = vrot.slane %v436, 1
      %v444 = vsel %vm321, %v442, %v443
      %v445 = vrot.slane %v435, 1
      %v446 = vrot.slane %v437, 1
      %v447 = vsel %vm321, %v445, %v446
      %448 = vrot.lane.b32.xlu0 %v444, 120
      %v449 = vpop.permute.xlu0 %448
      %450 = vrot.lane.b32.xlu0 %v447, 120
      %v451 = vpop.permute.xlu0 %450
      %v452 = vsel %vm299, %v449, %v451
      %v454 = vmul.f32 %v329, %v452
      %v455 = vadd.f32 %v433, %v454
      %456 = vrot.lane.b32.xlu0 %v444, 112
      %v457 = vpop.permute.xlu0 %456
      %458 = vrot.lane.b32.xlu0 %v447, 112
      %v459 = vpop.permute.xlu0 %458
      %v460 = vsel %vm309, %v457, %v459
      %v462 = vmul.f32 %v348, %v460
      %v463 = vadd.f32 %v455, %v462
      %v464 = vld [vmem:[%s250 + $0x10] sm:$0xfc]
      %v465 = vld [vmem:[%s250 + $0x20] sm:$0x3]
      %v466 = vmul.f32 %v359, %v464
      %v467 = vmul.f32 %v359, %v465
      %v470 = vrot.slane %v466, 2
      %v471 = vrot.slane %v467, 2
      %v472 = vsel %vm364, %v470, %v471
      %v474 = vadd.f32 %v463, %v472
      %v475 = vld [vmem:[%s250 + $0x10] sm:$0xfc]
      %v476 = vld [vmem:[%s250 + $0x18] sm:$0xfc]
      %v477 = vld [vmem:[%s250 + $0x20] sm:$0x3]
      %v478 = vld [vmem:[%s250 + $0x28] sm:$0x3]
      %v483 = vrot.slane %v475, 2
      %v484 = vrot.slane %v477, 2
      %v485 = vsel %vm364, %v483, %v484
      %v486 = vrot.slane %v476, 2
      %v487 = vrot.slane %v478, 2
      %v488 = vsel %vm364, %v486, %v487
      %489 = vrot.lane.b32.xlu0 %v485, 120
      %v490 = vpop.permute.xlu0 %489
      %491 = vrot.lane.b32.xlu0 %v488, 120
      %v492 = vpop.permute.xlu0 %491
      %v493 = vsel %vm299, %v490, %v492
      %v495 = vmul.f32 %v372, %v493
      %v496 = vadd.f32 %v474, %v495
      %497 = vrot.lane.b32.xlu0 %v485, 112
      %v498 = vpop.permute.xlu0 %497
      %499 = vrot.lane.b32.xlu0 %v488, 112
      %v500 = vpop.permute.xlu0 %499
      %v501 = vsel %vm309, %v498, %v500
      %v503 = vmul.f32 %v391, %v501
      %v504 = vadd.f32 %v496, %v503
      %505 = vst [vmem:[%s271 + $0x8] sm:$0xff] %v504
      %p506 = scmp.lt.s32.totalorder %s19, 1
      %s507 = scalar_select %p506, %s19, 1
      %p508 = scmp.lt.s32.totalorder %s20, 0
      %s509 = scalar_select %p508, %s20, 0
      %p510 = scmp.lt.s32.totalorder %s21, 0
      %s511 = scalar_select %p510, %s21, 0
      %s512 = smul.addr %s511, 2
      %s513 = smul.addr %s509, 2
      %s514 = sadd.s32 %s512, %s513
      %s515 = smul.addr %s507, 2
      %s516 = sadd.s32 %s514, %s515
      %s517 = smul.addr %s516, 8
      %s518 = scalar_lea.vmem %s3, %s517
      // Predicated region
      $region33: #{depthwise_conv2d.1} parent=31 // pred_check
        %p519 = pneg %p137
      $region34: #{depthwise_conv2d.1} parent=31 // pred_check_branch
        %521 = sbr.rel (%p519) target = $region36
      $region35: #{depthwise_conv2d.1} parent=31 // pred_region
        _
      $region36: #{depthwise_conv2d.1} parent=31 // pred_fallthru
        _
    $region32: #{depthwise_conv2d.1} parent=5 // pred_fallthru
      _
    %p522 = scmp.le.s32.totalorder 2, %s9
    // Predicated region
    $region37: #{depthwise_conv2d.1} parent=5 // pred_check
      %p523 = pneg %p522
    $region38: #{depthwise_conv2d.1} parent=5 // pred_check_branch
      %525 = sbr.rel (%p523) target = $region40
    $region39: #{depthwise_conv2d.1} parent=5 // pred_region
      %s526 = ssub.s32 %s9, 2
      // Predicated region
      $region41: #{depthwise_conv2d.1} parent=39 // pred_check
        %p527 = pneg %p143
      $region42: #{depthwise_conv2d.1} parent=39 // pred_check_branch
        %529 = sbr.rel (%p527) target = $region44
      $region43: #{depthwise_conv2d.1} parent=39 // pred_region
        %p530 = scmp.lt.s32.totalorder %s22, 1
        %s531 = scalar_select %p530, %s22, 1
        %p532 = scmp.lt.s32.totalorder %s23, 0
        %s533 = scalar_select %p532, %s23, 0
        %p534 = scmp.lt.s32.totalorder %s24, 0
        %s535 = scalar_select %p534, %s24, 0
        %s536 = smul.addr %s535, 2
        %s537 = smul.addr %s533, 2
        %s538 = sadd.s32 %s536, %s537
        %s539 = smul.addr %s531, 2
        %s540 = sadd.s32 %s538, %s539
        %s541 = smul.addr %s540, 8
        %s542 = scalar_lea.vmem %s3, %s541
      $region44: #{depthwise_conv2d.1} parent=39 // pred_fallthru
        _
    $region40: #{depthwise_conv2d.1} parent=5 // pred_fallthru
      _
  $region6: #{depthwise_conv2d.1} parent=0 // loop_footer
    %s13 = sadd.s32 1, %s9
  $region7: #{depthwise_conv2d.1} parent=0 // loop_footer_branch
    %8 = sbr.rel target = $region3
  $region8: #{depthwise_conv2d.1} parent=0 // loop_exit
    _

</llo_original>
